<compile_context>
chip_gen: v7x
topology: tpu7x:2x2x1
jax: 0.10.0
libtpu: 0.0.40
codegen_flags: <defaults>
</compile_context>

<pallas_src>
import jax
import jax.numpy as jnp
from jax import lax
from jax.experimental import pallas as pl
from jax.experimental.pallas import tpu as pltpu


# ---------------------------------------------------------------------------
# Pallas kernel: one full-depth, lane-dense MXU matmul per column tile.
#   w_ref  : (Cout, K_pad)       -- weight, resident across the grid
#   at_ref : (K_pad, COL_TILE)   -- im2col columns (batch merged into columns)
#   o_ref  : (Cout, COL_TILE)    -- lane-dense output tile (unmasked stores)
# ---------------------------------------------------------------------------
def _conv_matmul_kernel(w_ref, at_ref, o_ref):
    o_ref[...] = jnp.dot(
        w_ref[...], at_ref[...], preferred_element_type=jnp.float32
    ).astype(o_ref.dtype)


# ---------------------------------------------------------------------------
# CustomEntry.forward : conv_1(x)
# ---------------------------------------------------------------------------
def custom_entry_forward(x_nchw, weight_oihw, *, stride=2, padding=3):
    N, Cin, H, W = x_nchw.shape
    Cout, Cin_w, KH, KW = weight_oihw.shape
    assert Cin == Cin_w
    OH = (H + 2 * padding - KH) // stride + 1
    OW = (W + 2 * padding - KW) // stride + 1
    K = Cin * KH * KW            # 196
    P = OH * OW                  # 64
    NP = N * P                   # 128 at the test shape

    LANE = 128
    # Pad contraction depth to the v6e/v7x MXU depth (256); zero rows are exact.
    K_pad = ((K + 255) // 256) * 256
    # Lane-dense column tile: multiple of 128, capped at 512 (VMEM-friendly on v7x).
    col_tile = min(512, ((NP + LANE - 1) // LANE) * LANE)
    NP_pad = ((NP + col_tile - 1) // col_tile) * col_tile
    n_tiles = NP_pad // col_tile

    # --- im2col as pure strided slices (fused by XLA, exact f32, no MXU work) ---
    x_pad = jnp.pad(
        x_nchw, ((0, 0), (0, 0), (padding, padding), (padding, padding))
    )
    cols = []
    for kh in range(KH):
        for kw in range(KW):
            cols.append(
                lax.slice(
                    x_pad,
                    (0, 0, kh, kw),
                    (N, Cin, kh + stride * (OH - 1) + 1, kw + stride * (OW - 1) + 1),
                    (1, 1, stride, stride),
                )
            )  # (N, Cin, OH, OW) = x_pad[n, c, kh + 2*oh, kw + 2*ow]
    patches = jnp.stack(cols, axis=2)                      # (N, Cin, KH*KW, OH, OW)
    # Row index = c*KH*KW + kh*KW + kw  (matches weight.reshape(Cout, Cin*KH*KW)),
    # column index = n*P + oh*OW + ow.
    at = patches.transpose(1, 2, 0, 3, 4).reshape(K, NP)
    at = jnp.pad(at, ((0, K_pad - K), (0, NP_pad - NP)))

    w2d = jnp.pad(weight_oihw.reshape(Cout, K), ((0, 0), (0, K_pad - K)))

    out2d = pl.pallas_call(
        _conv_matmul_kernel,
        out_shape=jax.ShapeDtypeStruct((Cout, NP_pad), x_nchw.dtype),
        grid=(n_tiles,),
        in_specs=[
            # Weight: constant block index -> stays resident in VMEM.
            pl.BlockSpec((Cout, K_pad), lambda j: (0, 0)),
            # Streamed lane-dense column tile.
            pl.BlockSpec((K_pad, col_tile), lambda j: (0, j)),
        ],
        out_specs=pl.BlockSpec((Cout, col_tile), lambda j: (0, j)),
        compiler_params=pltpu.CompilerParams(
            dimension_semantics=("parallel",),
        ),
        cost_estimate=pl.CostEstimate(
            flops=2 * Cout * K_pad * NP_pad,
            transcendentals=0,
            bytes_accessed=4 * (Cout * K_pad + K_pad * NP_pad + Cout * NP_pad),
        ),
    )(w2d, at)

    # Drop zero-padded columns; cheap layout-plumbing transpose back to NCHW.
    return out2d[:, :NP].reshape(Cout, N, OH, OW).transpose(1, 0, 2, 3)


if __name__ == "__main__":
    key = jax.random.PRNGKey(0)
    kx, kw = jax.random.split(key)

    # Small deterministic inputs consistent with the module: Cin must be 4.
    N, Cin, H, W = 2, 4, 16, 16
    Cout, KH, KW = 64, 7, 7

    x = jax.random.normal(kx, (N, Cin, H, W), dtype=jnp.float32)
    # Kaiming-uniform-like deterministic init (matches Conv2d default scale).
    fan_in = Cin * KH * KW
    bound = 1.0 / jnp.sqrt(fan_in)
    weight = jax.random.uniform(
        kw, (Cout, Cin, KH, KW), dtype=jnp.float32, minval=-bound, maxval=bound
    )

    fwd = jax.jit(custom_entry_forward)
    y = fwd(x, weight)
    jax.block_until_ready(y)

    # Reference check against XLA's conv (same NCHW / OIHW semantics as PyTorch).
    y_ref = lax.conv_general_dilated(
        x, weight,
        window_strides=(2, 2),
        padding=((3, 3), (3, 3)),
        dimension_numbers=("NCHW", "OIHW", "NCHW"),
        precision=lax.Precision.HIGHEST,
    )
    assert y.shape == (N, Cout, H // 2, W // 2), y.shape
    assert jnp.allclose(y, y_ref, atol=1e-4, rtol=1e-4), float(
        jnp.max(jnp.abs(y - y_ref))
    )

    print("KERNEL_OK")
</pallas_src>

<mosaic_0001>
module attributes {stable_mosaic.version = 11 : i64} {
  func.func @_conv_matmul_kernel(%arg0: i32, %arg1: memref<64x256xf32, #tpu.memory_space<vmem>>, %arg2: memref<256x128xf32, #tpu.memory_space<vmem>>, %arg3: memref<64x128xf32, #tpu.memory_space<vmem>>) attributes {dimension_semantics = [#tpu.dimension_semantics<parallel>], iteration_bounds = array<i64: 1>, scalar_prefetch = 0 : i64, scratch_operands = 0 : i64, tpu.core_type = #tpu.core_type<tc>, window_params = [{pipeline_mode = #tpu.pipeline_mode<synchronous>, transform_indices = @transform_0, window_bounds = array<i64: 64, 256>}, {transform_indices = @transform_1, window_bounds = array<i64: 256, 128>}, {transform_indices = @transform_2, window_bounds = array<i64: 64, 128>}]} {
    %c0 = arith.constant 0 : index
    %c0_0 = arith.constant 0 : index
    %0 = vector.load %arg1[%c0, %c0_0] : memref<64x256xf32, #tpu.memory_space<vmem>>, vector<64x256xf32>
    %c0_1 = arith.constant 0 : index
    %c0_2 = arith.constant 0 : index
    %1 = vector.load %arg2[%c0_1, %c0_2] : memref<256x128xf32, #tpu.memory_space<vmem>>, vector<256x128xf32>
    %cst = arith.constant dense<0.000000e+00> : vector<64x128xf32>
    %2 = tpu.matmul %0, %1, %cst {dimension_numbers = #tpu.dot_dimension_numbers<[1], [0], [0], [1], [0, 0, 1, 1], [], []>} : vector<64x256xf32>, vector<256x128xf32>, vector<64x128xf32> -> vector<64x128xf32>
    %c0_3 = arith.constant 0 : index
    %c0_4 = arith.constant 0 : index
    %3 = vector.load %arg3[%c0_3, %c0_4] : memref<64x128xf32, #tpu.memory_space<vmem>>, vector<64x128xf32>
    tpu.vector_store %arg3[%c0_3, %c0_4], %2 {strides = array<i32>} : memref<64x128xf32, #tpu.memory_space<vmem>>, vector<64x128xf32>,
    return
  }
  func.func @transform_0(%arg0: i32) -> (i32, i32) {
    %c0_i32 = arith.constant 0 : i32
    %c0_i32_0 = arith.constant 0 : i32
    %c0_i32_1 = arith.constant 0 : i32
    return %c0_i32, %c0_i32_0 : i32, i32
  }
  func.func @transform_1(%arg0: i32) -> (i32, i32) {
    %c0_i32 = arith.constant 0 : i32
    %c0_i32_0 = arith.constant 0 : i32
    return %c0_i32, %arg0 : i32, i32
  }
  func.func @transform_2(%arg0: i32) -> (i32, i32) {
    %c0_i32 = arith.constant 0 : i32
    %c0_i32_0 = arith.constant 0 : i32
    return %c0_i32, %arg0 : i32, i32
  }
}

</mosaic_0001>

<llo_original>
// kernel: custom_entry_forward.1
$region0: #{custom_entry_forward.1}
  #allocation0 [shape = 'u32[]', space=smem, size = 0x4, offset = 0x4, fixed_abs, tag = 'smem constant byte address 0x4 - core index']
  #allocation1 [shape = 'u32[144,128]{1,0:T(1,128)}', space=vmem, size = 0x12000, scoped, tag = 'internal scratch']
  %s0 = inlined_call_operand.vmem [shape: f32[64,256], index: 0, kind: input, shape index: {}]
  %s1 = inlined_call_operand.vmem [shape: f32[256,128], index: 1, kind: input, shape index: {}]
  %s2 = inlined_call_operand.vmem [shape: f32[64,128], index: 2, kind: output, shape index: {}]
  %s3 = sld [smem:[#allocation0]]
  $region18: #{custom_entry_forward.1} parent=0
    _
  %s5 = ssub.s32 1, %s3
  %s6 = scalar_select 0, %s5, %s3
  // Predicated region
  $region2: #{custom_entry_forward.1} parent=0 // pred_check
    _
  $region3: #{custom_entry_forward.1} parent=0 // pred_check_branch
    %8 = sbr.rel (0) target = $region5
  $region4: #{custom_entry_forward.1} parent=0 // pred_region
    _
  $region5: #{custom_entry_forward.1} parent=0 // pred_fallthru
    _
  // Predicated region
  $region6: #{custom_entry_forward.1} parent=0 // pred_check
    _
  $region7: #{custom_entry_forward.1} parent=0 // pred_check_branch
    %10 = sbr.rel (0) target = $region9
  $region8: #{custom_entry_forward.1} parent=0 // pred_region
    _
  $region9: #{custom_entry_forward.1} parent=0 // pred_fallthru
    _
  %v11 = vld [vmem:[%s0] sm:$0xff]
  %v12 = vld [vmem:[%s0 + $0x8] sm:$0xff]
  %v13 = vld [vmem:[%s0 + $0x10] sm:$0xff]
  %v14 = vld [vmem:[%s0 + $0x18] sm:$0xff]
  %v15 = vld [vmem:[%s0 + $0x20] sm:$0xff]
  %v16 = vld [vmem:[%s0 + $0x28] sm:$0xff]
  %v17 = vld [vmem:[%s0 + $0x30] sm:$0xff]
  %v18 = vld [vmem:[%s0 + $0x38] sm:$0xff]
  %v19 = vld [vmem:[%s0 + $0x40] sm:$0xff]
  %v20 = vld [vmem:[%s0 + $0x48] sm:$0xff]
  %v21 = vld [vmem:[%s0 + $0x50] sm:$0xff]
  %v22 = vld [vmem:[%s0 + $0x58] sm:$0xff]
  %v23 = vld [vmem:[%s0 + $0x60] sm:$0xff]
  %v24 = vld [vmem:[%s0 + $0x68] sm:$0xff]
  %v25 = vld [vmem:[%s0 + $0x70] sm:$0xff]
  %v26 = vld [vmem:[%s0 + $0x78] sm:$0xff]
  %v27 = vld [vmem:[%s1] sm:$0xff]
  %v28 = vld [vmem:[%s1 + $0x8] sm:$0xff]
  %v29 = vld [vmem:[%s1 + $0x10] sm:$0xff]
  %v30 = vld [vmem:[%s1 + $0x18] sm:$0xff]
  %v31 = vld [vmem:[%s1 + $0x20] sm:$0xff]
  %v32 = vld [vmem:[%s1 + $0x28] sm:$0xff]
  %v33 = vld [vmem:[%s1 + $0x30] sm:$0xff]
  %v34 = vld [vmem:[%s1 + $0x38] sm:$0xff]
  %v35 = vld [vmem:[%s1 + $0x40] sm:$0xff]
  %v36 = vld [vmem:[%s1 + $0x48] sm:$0xff]
  %v37 = vld [vmem:[%s1 + $0x50] sm:$0xff]
  %v38 = vld [vmem:[%s1 + $0x58] sm:$0xff]
  %v39 = vld [vmem:[%s1 + $0x60] sm:$0xff]
  %v40 = vld [vmem:[%s1 + $0x68] sm:$0xff]
  %v41 = vld [vmem:[%s1 + $0x70] sm:$0xff]
  %v42 = vld [vmem:[%s1 + $0x78] sm:$0xff]
  %v43 = vld [vmem:[%s1 + $0x80] sm:$0xff]
  %v44 = vld [vmem:[%s1 + $0x88] sm:$0xff]
  %v45 = vld [vmem:[%s1 + $0x90] sm:$0xff]
  %v46 = vld [vmem:[%s1 + $0x98] sm:$0xff]
  %v47 = vld [vmem:[%s1 + $0xa0] sm:$0xff]
  %v48 = vld [vmem:[%s1 + $0xa8] sm:$0xff]
  %v49 = vld [vmem:[%s1 + $0xb0] sm:$0xff]
  %v50 = vld [vmem:[%s1 + $0xb8] sm:$0xff]
  %v51 = vld [vmem:[%s1 + $0xc0] sm:$0xff]
  %v52 = vld [vmem:[%s1 + $0xc8] sm:$0xff]
  %v53 = vld [vmem:[%s1 + $0xd0] sm:$0xff]
  %v54 = vld [vmem:[%s1 + $0xd8] sm:$0xff]
  %v55 = vld [vmem:[%s1 + $0xe0] sm:$0xff]
  %v56 = vld [vmem:[%s1 + $0xe8] sm:$0xff]
  %v57 = vld [vmem:[%s1 + $0xf0] sm:$0xff]
  %v58 = vld [vmem:[%s1 + $0xf8] sm:$0xff]
  %59 = vmatprep.subr.mxu0 0.0
  %60 = vmatpush1.msra.mxu0 %v27
  %61 = vmatprep.subr.mxu0 0.0
  %62 = vmatpush1.msra.mxu0 %v28
  %63 = vmatprep.subr.mxu0 0.0
  %64 = vmatpush1.msra.mxu0 %v29
  %65 = vmatprep.subr.mxu0 0.0
  %66 = vmatpush1.msra.mxu0 %v30
  %67 = vmatprep.subr.mxu0 0.0
  %68 = vmatpush1.msra.mxu0 %v31
  %69 = vmatprep.subr.mxu0 0.0
  %70 = vmatpush1.msra.mxu0 %v32
  %71 = vmatprep.subr.mxu0 0.0
  %72 = vmatpush1.msra.mxu0 %v33
  %73 = vmatprep.subr.mxu0 0.0
  %74 = vmatpush1.msra.mxu0 %v34
  %75 = vmatprep.subr.mxu0 0.0
  %76 = vmatpush1.msra.mxu0 %v35
  %77 = vmatprep.subr.mxu0 0.0
  %78 = vmatpush1.msra.mxu0 %v36
  %79 = vmatprep.subr.mxu0 0.0
  %80 = vmatpush1.msra.mxu0 %v37
  %81 = vmatprep.subr.mxu0 0.0
  %82 = vmatpush1.msra.mxu0 %v38
  %83 = vmatprep.subr.mxu0 0.0
  %84 = vmatpush1.msra.mxu0 %v39
  %85 = vmatprep.subr.mxu0 0.0
  %86 = vmatpush1.msra.mxu0 %v40
  %87 = vmatprep.subr.mxu0 0.0
  %88 = vmatpush1.msra.mxu0 %v41
  %89 = vmatprep.subr.mxu0 0.0
  %90 = vmatpush1.msra.mxu0 %v42
  %91 = vmatprep.subr.mxu0 0.0
  %92 = vmatpush1.msra.mxu0 %v43
  %93 = vmatprep.subr.mxu0 0.0
  %94 = vmatpush1.msra.mxu0 %v44
  %95 = vmatprep.subr.mxu0 0.0
  %96 = vmatpush1.msra.mxu0 %v45
  %97 = vmatprep.subr.mxu0 0.0
  %98 = vmatpush1.msra.mxu0 %v46
  %99 = vmatprep.subr.mxu0 0.0
  %100 = vmatpush1.msra.mxu0 %v47
  %101 = vmatprep.subr.mxu0 0.0
  %102 = vmatpush1.msra.mxu0 %v48
  %103 = vmatprep.subr.mxu0 0.0
  %104 = vmatpush1.msra.mxu0 %v49
  %105 = vmatprep.subr.mxu0 0.0
  %106 = vmatpush1.msra.mxu0 %v50
  %107 = vmatprep.subr.mxu0 0.0
  %108 = vmatpush1.msra.mxu0 %v51
  %109 = vmatprep.subr.mxu0 0.0
  %110 = vmatpush1.msra.mxu0 %v52
  %111 = vmatprep.subr.mxu0 0.0
  %112 = vmatpush1.msra.mxu0 %v53
  %113 = vmatprep.subr.mxu0 0.0
  %114 = vmatpush1.msra.mxu0 %v54
  %115 = vmatprep.subr.mxu0 0.0
  %116 = vmatpush1.msra.mxu0 %v55
  %117 = vmatprep.subr.mxu0 0.0
  %118 = vmatpush1.msra.mxu0 %v56
  %119 = vmatprep.subr.mxu0 0.0
  %120 = vmatpush1.msra.mxu0 %v57
  %121 = vmatprep.subr.mxu0 0.0
  %122 = vmatpush1.msra.mxu0 %v58
  %123 = vmatprep.mubr.f32.mxu0 %v12
  %124 = vmatmul.mubr.f32.gmra.mrb[0].mxu0 %v11
  %v125 = vpop.f32.mrb[0].mxu0
  %v126 = vadd.f32 0.0, %v125
  %v127 = vpop.f32.mrb[0].mxu0
  %128 = vmatprep.mubr.f32.mxu0 %v14
  %129 = vmatmul.mubr.f32.gmra.mrb[0].mxu0 %v13
  %v130 = vpop.f32.mrb[0].mxu0
  %v131 = vadd.f32 0.0, %v130
  %v132 = vpop.f32.mrb[0].mxu0
  %133 = vmatprep.mubr.f32.mxu0 %v16
  %134 = vmatmul.mubr.f32.gmra.mrb[0].mxu0 %v15
  %v135 = vpop.f32.mrb[0].mxu0
  %v136 = vadd.f32 0.0, %v135
  %v137 = vpop.f32.mrb[0].mxu0
  %138 = vmatprep.mubr.f32.mxu0 %v18
  %139 = vmatmul.mubr.f32.gmra.mrb[0].mxu0 %v17
  %v140 = vpop.f32.mrb[0].mxu0
  %v141 = vadd.f32 0.0, %v140
  %v142 = vpop.f32.mrb[0].mxu0
  %143 = vmatprep.mubr.f32.mxu0 %v20
  %144 = vmatmul.mubr.f32.gmra.mrb[0].mxu0 %v19
  %v145 = vpop.f32.mrb[0].mxu0
  %v146 = vadd.f32 0.0, %v145
  %v147 = vpop.f32.mrb[0].mxu0
  %148 = vmatprep.mubr.f32.mxu0 %v22
  %149 = vmatmul.mubr.f32.gmra.mrb[0].mxu0 %v21
  %v150 = vpop.f32.mrb[0].mxu0
  %v151 = vadd.f32 0.0, %v150
  %v152 = vpop.f32.mrb[0].mxu0
  %153 = vmatprep.mubr.f32.mxu0 %v24
  %154 = vmatmul.mubr.f32.gmra.mrb[0].mxu0 %v23
  %v155 = vpop.f32.mrb[0].mxu0
  %v156 = vadd.f32 0.0, %v155
  %v157 = vpop.f32.mrb[0].mxu0
  %158 = vmatprep.mubr.f32.mxu0 %v26
  %159 = vmatmul.mubr.f32.gmra.mrb[0].mxu0 %v25
  %v160 = vpop.f32.mrb[0].mxu0
  %v161 = vadd.f32 0.0, %v160
  %v162 = vpop.f32.mrb[0].mxu0
  %163 = vdwg.mxu0
  %164 = vst [vmem:[%s2] sm:$0xff] %v126
  %165 = vst [vmem:[%s2 + $0x8] sm:$0xff] %v131
  %166 = vst [vmem:[%s2 + $0x10] sm:$0xff] %v136
  %167 = vst [vmem:[%s2 + $0x18] sm:$0xff] %v141
  %168 = vst [vmem:[%s2 + $0x20] sm:$0xff] %v146
  %169 = vst [vmem:[%s2 + $0x28] sm:$0xff] %v151
  %170 = vst [vmem:[%s2 + $0x30] sm:$0xff] %v156
  %171 = vst [vmem:[%s2 + $0x38] sm:$0xff] %v161
  // Predicated region
  $region10: #{custom_entry_forward.1} parent=0 // pred_check
    _
  $region11: #{custom_entry_forward.1} parent=0 // pred_check_branch
    %173 = sbr.rel (0) target = $region13
  $region12: #{custom_entry_forward.1} parent=0 // pred_region
    _
  $region13: #{custom_entry_forward.1} parent=0 // pred_fallthru
    _
  // Predicated region
  $region14: #{custom_entry_forward.1} parent=0 // pred_check
    _
  $region15: #{custom_entry_forward.1} parent=0 // pred_check_branch
    %175 = sbr.rel (0) target = $region17
  $region16: #{custom_entry_forward.1} parent=0 // pred_region
    _
  $region17: #{custom_entry_forward.1} parent=0 // pred_fallthru
    _

</llo_original>
